<compile_context>
chip_gen: v6e
topology: v6e:2x2x1
jax: 0.10.0
libtpu: 0.0.40
codegen_flags: <defaults>
</compile_context>

<pallas_src>
import math

import jax
import jax.numpy as jnp
from jax.experimental import pallas as pl
from jax.experimental.pallas import tpu as pltpu


def time_embedding_kernel(t_ref, freq_ref, w1_ref, b1_ref, w2_ref, b2_ref,
                          out_ref):
    """One batch tile of the forward pass, fully resident in VMEM.

    t_ref   : (Bt, 1)   timesteps
    freq_ref: (1, H)    exp(-log(10000) * k / (H-1)),  H = n_channels // 8
    w1_ref  : (2H, C)   first linear weight, (in, out) layout
    b1_ref  : (1, C)
    w2_ref  : (C, C)    second linear weight, (in, out) layout
    b2_ref  : (1, C)
    out_ref : (Bt, C)
    """
    t = t_ref[...]                          # (Bt, 1)
    freqs = freq_ref[...]                   # (1, H)
    emb = t * freqs                         # (Bt, H) broadcasted outer product

    # concat([sin, cos], dim=1) -> single (Bt, 2H) operand, one MXU matmul.
    emb_cat = jnp.concatenate([jnp.sin(emb), jnp.cos(emb)], axis=-1)

    h = (jnp.dot(emb_cat, w1_ref[...], preferred_element_type=jnp.float32)
         + b1_ref[...])                     # (Bt, C)

    # SiLU: sigmoid(x) * x   (sigmoid goes to the EUP, mul to the VPU)
    h = jax.nn.sigmoid(h) * h

    out = jnp.dot(h, w2_ref[...], preferred_element_type=jnp.float32) + b2_ref[...]
    out_ref[...] = out.astype(out_ref.dtype)


def time_embedding(t, freqs, w1, b1, w2, b2, *, block_b=128):
    """Launches the fused TimeEmbedding kernel.

    t    : (B,) float32 timesteps
    freqs: (H,) sinusoidal frequency table, H = n_channels // 8
    w1   : (2H, C) = (n_channels // 4, n_channels), (in, out) layout
    b1   : (C,)
    w2   : (C, C), (in, out) layout
    b2   : (C,)
    """
    B = t.shape[0]
    C = w2.shape[0]
    H = freqs.shape[0]
    assert w1.shape == (2 * H, C)
    assert w2.shape == (C, C)

    t2 = t.astype(jnp.float32).reshape(B, 1)
    freqs2 = freqs.astype(jnp.float32).reshape(1, H)
    b1_2 = b1.reshape(1, C)
    b2_2 = b2.reshape(1, C)
    out_shape = jax.ShapeDtypeStruct((B, C), jnp.float32)

    if B % block_b == 0 and B // block_b > 1:
        # Large batch: tile over B only; weights stay resident (block (0,0)
        # every grid step); "parallel" lets v7x shard across both TCs.
        grid = (B // block_b,)
        return pl.pallas_call(
            time_embedding_kernel,
            out_shape=out_shape,
            grid=grid,
            in_specs=[
                pl.BlockSpec((block_b, 1), lambda i: (i, 0)),
                pl.BlockSpec((1, H), lambda i: (0, 0)),
                pl.BlockSpec((2 * H, C), lambda i: (0, 0)),
                pl.BlockSpec((1, C), lambda i: (0, 0)),
                pl.BlockSpec((C, C), lambda i: (0, 0)),
                pl.BlockSpec((1, C), lambda i: (0, 0)),
            ],
            out_specs=pl.BlockSpec((block_b, C), lambda i: (i, 0)),
            compiler_params=pltpu.CompilerParams(
                dimension_semantics=("parallel",)),
        )(t2, freqs2, w1, b1_2, w2, b2_2)

    # Small batch: no grid, no pipelining, everything single-buffered in VMEM.
    vmem = pl.BlockSpec(memory_space=pltpu.MemorySpace.VMEM)
    return pl.pallas_call(
        time_embedding_kernel,
        out_shape=out_shape,
        in_specs=[vmem] * 6,
        out_specs=vmem,
    )(t2, freqs2, w1, b1_2, w2, b2_2)


def time_embedding_ref(t, freqs, w1, b1, w2, b2):
    """Pure-JAX reference mirroring the PyTorch forward exactly."""
    emb = t[:, None].astype(jnp.float32) * freqs[None, :]
    emb = jnp.concatenate([jnp.sin(emb), jnp.cos(emb)], axis=1)
    h = emb @ w1 + b1
    h = jax.nn.sigmoid(h) * h
    return h @ w2 + b2


if __name__ == "__main__":
    n_channels = 32                      # module hyperparameter
    half_dim = n_channels // 8           # = 4
    in1 = n_channels // 4                # = 8  (sin/cos concat width)

    key = jax.random.PRNGKey(0)
    k_t, k_w1, k_b1, k_w2, k_b2, k_t2 = jax.random.split(key, 6)

    # Deterministic synthetic parameters (roughly nn.Linear-scaled).
    w1 = jax.random.normal(k_w1, (in1, n_channels), jnp.float32) / math.sqrt(in1)
    b1 = jax.random.normal(k_b1, (n_channels,), jnp.float32) * 0.01
    w2 = jax.random.normal(k_w2, (n_channels, n_channels), jnp.float32) / math.sqrt(n_channels)
    b2 = jax.random.normal(k_b2, (n_channels,), jnp.float32) * 0.01

    # Sinusoidal frequency table: exp(arange(H) * -log(10000) / (H - 1))
    freqs = jnp.exp(
        jnp.arange(half_dim, dtype=jnp.float32)
        * (-math.log(10000.0) / (half_dim - 1))
    )

    # --- small batch: grid-less, fully-resident path -------------------------
    B_small = 8
    t_small = jax.random.uniform(k_t, (B_small,), jnp.float32, 0.0, 1000.0)
    out_small = jax.block_until_ready(
        time_embedding(t_small, freqs, w1, b1, w2, b2))
    ref_small = time_embedding_ref(t_small, freqs, w1, b1, w2, b2)
    assert out_small.shape == (B_small, n_channels)
    assert jnp.allclose(out_small, ref_small, atol=1e-4, rtol=1e-4), \
        "small-batch mismatch vs JAX reference"

    # --- large batch: batch-tiled, weights-resident, parallel grid path ------
    B_large = 256
    t_large = jax.random.uniform(k_t2, (B_large,), jnp.float32, 0.0, 1000.0)
    out_large = jax.block_until_ready(
        time_embedding(t_large, freqs, w1, b1, w2, b2, block_b=128))
    ref_large = time_embedding_ref(t_large, freqs, w1, b1, w2, b2)
    assert out_large.shape == (B_large, n_channels)
    assert jnp.allclose(out_large, ref_large, atol=1e-4, rtol=1e-4), \
        "large-batch mismatch vs JAX reference"

    print("KERNEL_OK")
</pallas_src>

<mosaic_0001>
module attributes {stable_mosaic.version = 11 : i64} {
  func.func @time_embedding_kernel(%arg0: memref<8x1xf32, #tpu.memory_space<vmem>>, %arg1: memref<1x4xf32, #tpu.memory_space<vmem>>, %arg2: memref<8x32xf32, #tpu.memory_space<vmem>>, %arg3: memref<1x32xf32, #tpu.memory_space<vmem>>, %arg4: memref<32x32xf32, #tpu.memory_space<vmem>>, %arg5: memref<1x32xf32, #tpu.memory_space<vmem>>, %arg6: memref<8x32xf32, #tpu.memory_space<vmem>>) attributes {dimension_semantics = [], scalar_prefetch = 0 : i64, scratch_operands = 0 : i64, tpu.core_type = #tpu.core_type<tc>} {
    %c0 = arith.constant 0 : index
    %c0_0 = arith.constant 0 : index
    %0 = vector.load %arg0[%c0, %c0_0] : memref<8x1xf32, #tpu.memory_space<vmem>>, vector<8x1xf32>
    %c0_1 = arith.constant 0 : index
    %c0_2 = arith.constant 0 : index
    %1 = vector.load %arg1[%c0_1, %c0_2] : memref<1x4xf32, #tpu.memory_space<vmem>>, vector<1x4xf32>
    %2 = vector.broadcast %0 : vector<8x1xf32> to vector<8x4xf32>
    %3 = vector.broadcast %1 : vector<1x4xf32> to vector<8x4xf32>
    %4 = arith.mulf %2, %3 : vector<8x4xf32>
    %5 = math.sin %4 : vector<8x4xf32>
    %6 = math.cos %4 : vector<8x4xf32>
    %7 = tpu.concatenate %5, %6 in 1 : vector<8x4xf32>, vector<8x4xf32> -> vector<8x8xf32>
    %c0_3 = arith.constant 0 : index
    %c0_4 = arith.constant 0 : index
    %8 = vector.load %arg2[%c0_3, %c0_4] : memref<8x32xf32, #tpu.memory_space<vmem>>, vector<8x32xf32>
    %cst = arith.constant dense<0.000000e+00> : vector<8x32xf32>
    %9 = tpu.matmul %7, %8, %cst {dimension_numbers = #tpu.dot_dimension_numbers<[1], [0], [0], [1], [0, 0, 1, 1], [], []>} : vector<8x8xf32>, vector<8x32xf32>, vector<8x32xf32> -> vector<8x32xf32>
    %c0_5 = arith.constant 0 : index
    %c0_6 = arith.constant 0 : index
    %10 = vector.load %arg3[%c0_5, %c0_6] : memref<1x32xf32, #tpu.memory_space<vmem>>, vector<1x32xf32>
    %11 = vector.broadcast %10 : vector<1x32xf32> to vector<8x32xf32>
    %12 = arith.addf %9, %11 : vector<8x32xf32>
    %13 = arith.negf %12 : vector<8x32xf32>
    %14 = math.exp %13 : vector<8x32xf32>
    %cst_7 = arith.constant 1.000000e+00 : f32
    %15 = vector.broadcast %cst_7 : f32 to vector<8x32xf32>
    %16 = arith.addf %15, %14 : vector<8x32xf32>
    %17 = arith.divf %15, %16 : vector<8x32xf32>
    %18 = arith.mulf %17, %12 : vector<8x32xf32>
    %c0_8 = arith.constant 0 : index
    %c0_9 = arith.constant 0 : index
    %19 = vector.load %arg4[%c0_8, %c0_9] : memref<32x32xf32, #tpu.memory_space<vmem>>, vector<32x32xf32>
    %cst_10 = arith.constant dense<0.000000e+00> : vector<8x32xf32>
    %20 = tpu.matmul %18, %19, %cst_10 {dimension_numbers = #tpu.dot_dimension_numbers<[1], [0], [0], [1], [0, 0, 1, 1], [], []>} : vector<8x32xf32>, vector<32x32xf32>, vector<8x32xf32> -> vector<8x32xf32>
    %c0_11 = arith.constant 0 : index
    %c0_12 = arith.constant 0 : index
    %21 = vector.load %arg5[%c0_11, %c0_12] : memref<1x32xf32, #tpu.memory_space<vmem>>, vector<1x32xf32>
    %22 = vector.broadcast %21 : vector<1x32xf32> to vector<8x32xf32>
    %23 = arith.addf %20, %22 : vector<8x32xf32>
    %c0_13 = arith.constant 0 : index
    %c0_14 = arith.constant 0 : index
    %24 = vector.load %arg6[%c0_13, %c0_14] : memref<8x32xf32, #tpu.memory_space<vmem>>, vector<8x32xf32>
    tpu.vector_store %arg6[%c0_13, %c0_14], %23 {strides = array<i32>} : memref<8x32xf32, #tpu.memory_space<vmem>>, vector<8x32xf32>,
    return
  }
}

</mosaic_0001>

<llo_original>
// kernel: tpu_custom_call.1
$region0: #{tpu_custom_call.1}
  #allocation0 [shape = 'u32[]', space=smem, size = 0x4, offset = 0x4, fixed_abs, tag = 'smem constant byte address 0x4 - core index']
  #allocation1 [shape = 'u32[144,128]{1,0:T(1,128)}', space=vmem, size = 0x12000, scoped, tag = 'internal scratch']
  %s0 = inlined_call_operand.vmem [shape: f32[8,1], index: 0, kind: input, shape index: {}]
  %s1 = inlined_call_operand.vmem [shape: f32[1,4], index: 1, kind: input, shape index: {}]
  %s2 = inlined_call_operand.vmem [shape: f32[8,32], index: 2, kind: input, shape index: {}]
  %s3 = inlined_call_operand.vmem [shape: f32[1,32], index: 3, kind: input, shape index: {}]
  %s4 = inlined_call_operand.hbm [shape: f32[32,32], index: 4, kind: input, shape index: {}]
  %s5 = inlined_call_operand.vmem [shape: f32[1,32], index: 5, kind: input, shape index: {}]
  %s6 = inlined_call_operand.hbm [shape: f32[8,32], index: 6, kind: output, shape index: {}]
  %s7 = sld [smem:[#allocation0]]
  $region38: #{tpu_custom_call.1} parent=0
    _
  %s9 = ssub.s32 1, %s7
  %s10 = scalar_select 0, %s9, %s7
  $region1: #{tpu_custom_call.1} parent=0
    #allocation2 [shape = 'u8[16384]{0}', space=vmem, size = 0x4000, scoped, tag = 'input window, operand 4, single buffered']
    #allocation3 [shape = 's32[1]{0}', space=sflag, size = 0x4, scoped, tag = 'scoped memory for tpu_custom_call.1']
    #allocation4 [shape = 's32[1]{0}', space=sflag, size = 0x4, scoped, tag = 'scoped memory for tpu_custom_call.1']
    #allocation5 [shape = 'u8[4096]{0}', space=vmem, size = 0x1000, scoped, tag = 'output window, operand 0, single buffered']
    %11 = vsyncpa [#allocation3], 0
    %12 = vsyncpa [#allocation4], 0
    // Predicated region
    $region2: #{tpu_custom_call.1} parent=1 // pred_check
      _
    $region3: #{tpu_custom_call.1} parent=1 // pred_check_branch
      %14 = sbr.rel (0) target = $region5
    $region4: #{tpu_custom_call.1} parent=1 // pred_region
      _
    $region5: #{tpu_custom_call.1} parent=1 // pred_fallthru
      _
    // Predicated region
    $region6: #{tpu_custom_call.1} parent=1 // pred_check
      _
    $region7: #{tpu_custom_call.1} parent=1 // pred_check_branch
      %16 = sbr.rel (0) target = $region9
    $region8: #{tpu_custom_call.1} parent=1 // pred_region
      _
    $region9: #{tpu_custom_call.1} parent=1 // pred_fallthru
      _
    // Predicated region
    $region10: #{tpu_custom_call.1} parent=1 // pred_check
      _
    $region11: #{tpu_custom_call.1} parent=1 // pred_check_branch
      %18 = sbr.rel (0) target = $region13
    $region12: #{tpu_custom_call.1} parent=1 // pred_region
      _
    $region13: #{tpu_custom_call.1} parent=1 // pred_fallthru
      _
    // Predicated region
    $region14: #{tpu_custom_call.1} parent=1 // pred_check
      _
    $region15: #{tpu_custom_call.1} parent=1 // pred_check_branch
      %20 = sbr.rel (0) target = $region17
    $region16: #{tpu_custom_call.1} parent=1 // pred_region
      _
    $region17: #{tpu_custom_call.1} parent=1 // pred_fallthru
      _
    // Predicated region
    $region18: #{tpu_custom_call.1} parent=1 // pred_check
      _
    $region19: #{tpu_custom_call.1} parent=1 // pred_check_branch
      %22 = sbr.rel (0) target = $region21
    $region20: #{tpu_custom_call.1} parent=1 // pred_region
      %s24 = ssub.s32 512, 512
      %25 = vsyncadd [#allocation3], %s24
      %s26 = sshll.u32 [#allocation2], 4
      %s27 = int_to_ptr.vmem [resolvable:$true] %s26
      %32 = dma.hbm_to_vmem [thread:$0]  %s4, 512, %s27, [#allocation3], 128, 128, 8
    $region21: #{tpu_custom_call.1} parent=1 // pred_fallthru
      _
    // Predicated region
    $region22: #{tpu_custom_call.1} parent=1 // pred_check
      _
    $region23: #{tpu_custom_call.1} parent=1 // pred_check_branch
      %34 = sbr.rel (0) target = $region25
    $region24: #{tpu_custom_call.1} parent=1 // pred_region
      _
    $region25: #{tpu_custom_call.1} parent=1 // pred_fallthru
      _
    // Predicated region
    $region26: #{tpu_custom_call.1} parent=1 // pred_check
      _
    $region27: #{tpu_custom_call.1} parent=1 // pred_check_branch
      %36 = sbr.rel (0) target = $region29
    $region28: #{tpu_custom_call.1} parent=1 // pred_region
      %37 = dma.done [#allocation3], 512
    $region29: #{tpu_custom_call.1} parent=1 // pred_fallthru
      _
    %v38 = vld [vmem:[%s0] sm:$0xff]
    %v39 = vld [vmem:[%s1] sm:$0x1]
    %41 = vset.pattern.permute.xlu0 0
    %42 = vperm.xlu0 %41, %v38
    %v43 = vpop.permute.xlu0 %42
    %v46 = vlaneseq
    %v47 = vshrl.u32 %v46, 7
    %v48 = vsub.s32 0, %v47
    %v49 = vrot.slane %v39, %v48
    %v51 = vmul.f32 %v43, %v49
    %v52 = vand.u32 2147483647, %v51
    %vm53 = vcmp.le.f32.partialorder %v52, 0.7853982
    %vm54 = vcmp.lt.s32.totalorder %v51, 0
    %v55 = vand.u32 %v51, 2139095040
    %v56 = vshrl.u32 %v55, 23
    %v57 = vsub.s32 %v56, 127
    %v58 = vand.u32 2147483647, %v51
    %v59 = vand.u32 %v58, 8388607
    %v60 = vor.u32 %v59, 8388608
    %v61 = vsub.s32 0, %v60
    %v62 = vadd.s32 %v57, 1
    %vm63 = vcmp.gt.s32.totalorder %v62, 0
    %v64 = vsel %vm63, %v62, 0
    %v65 = vshrl.u32 %v64, 5
    %v66 = vand.u32 %v64, 31
    %v67 = vsub.s32 32, %v66
    %v68 = vshrl.u32 683565275, %v67
    %v69 = vshll.u32 683565275, %v66
    %v70 = vshrl.u32 2475754826, %v67
    %v71 = vor.u32 %v69, %v70
    %v72 = vshll.u32 2475754826, %v66
    %v73 = vshrl.u32 2131351028, %v67
    %v74 = vor.u32 %v72, %v73
    %v75 = vshll.u32 2131351028, %v66
    %v76 = vshrl.u32 2102212464, %v67
    %v77 = vor.u32 %v75, %v76
    %v78 = vshll.u32 2102212464, %v66
    %v79 = vshrl.u32 920167782, %v67
    %v80 = vor.u32 %v78, %v79
    %v81 = vshll.u32 920167782, %v66
    %v82 = vshrl.u32 1326507024, %v67
    %v83 = vor.u32 %v81, %v82
    %vm84 = vcmp.lt.s32.totalorder %v65, 1
    %vm85 = vcmp.lt.s32.totalorder %v65, 2
    %vm86 = vcmp.lt.s32.totalorder %v65, 3
    %vm87 = vcmp.lt.s32.totalorder %v65, 4
    %v88 = vsel %vm84, %v68, %v71
    %v89 = vsel %vm87, %v77, 2102212464
    %v90 = vsel %vm86, %v74, %v89
    %v91 = vsel %vm85, %v88, %v90
    %v92 = vsel %vm84, %v71, %v74
    %v93 = vsel %vm87, %v80, 920167782
    %v94 = vsel %vm86, %v77, %v93
    %v95 = vsel %vm85, %v92, %v94
    %v96 = vsel %vm84, %v74, %v77
    %v97 = vsel %vm87, %v83, 1326507024
    %v98 = vsel %vm86, %v80, %v97
    %v99 = vsel %vm85, %v96, %v98
    %v100 = vshll.u32 %v60, 8
    %v101 = vmul.u32.u64.compose %v100, %v99
    %v102 = vextract.low.u32 %v101
    %v103 = vextract.high.u32 %v101
    %v104 = vmul.u32.u64.compose %v100, %v95
    %v105 = vextract.low.u32 %v104
    %v106 = vextract.high.u32 %v104
    %v107 = vmul.u32 %v100, %v91
    %v108 = vadd.s32 %v103, %v105
    %vm109 = vc.u32 %v103, %v105
    %v110 = vadd.s32 %v106, 1
    %v111 = vsel %vm109, %v110, %v106
    %v112 = vadd.s32 %v107, %v111
    %v113 = vadd.s32 %v112, 536870912
    %v114 = vshrl.u32 %v113, 30
    %v115 = vshll.u32 %v114, 30
    %v116 = vsub.s32 %v112, %v115
    %vm117 = vcmp.lt.s32.totalorder %v116, 0
    %v118 = vsub.s32 0, %v116
    %v119 = vsel %vm117, %v118, %v116
    %v120 = vclz %v119
    %v121 = vsub.s32 %v120, 2
    %vm122 = vcmp.gt.s32.totalorder 0, %v121
    %v123 = vsel %vm122, 0, %v121
    %v124 = vsub.s32 32, %v123
    %v125 = vshll.u32 %v116, %v123
    %v126 = vshrl.u32 %v108, %v124
    %v127 = vor.u32 %v125, %v126
    %v128 = vsub.s32 4294967266, %v123
    %v129 = vadd.s32 %v128, 127
    %v130 = vshll.u32 %v129, 23
    %v131 = vor.u32 4788187, %v130
    %v132 = vand.u32 2147483647, %v131
    %v134 = vcvt.s32.f32 %v127
    %v135 = vmul.f32 %v134, %v132
    %v136 = vxor.u32 %v135, 2147483648
    %v137 = vsel %vm54, %v136, %v135
    %v138 = vsub.s32 4, %v114
    %v139 = vsel %vm54, %v138, %v114
    %v140 = vsel %vm53, %v51, %v137
    %v141 = vsel %vm53, 0, %v139
    %v142 = vcosq.f32.pop %v140
    %v143 = vsinq.f32.pop %v140
    %vm144 = vweird.f32 %v51
    %v145 = vadd.s32 %v141, 3
    %v146 = vand.u32 %v145, 3
    %vm147 = vcmp.lt.s32.totalorder %v146, 2
    %vm148 = vcmp.eq.s32.totalorder %v146, 0
    %v149 = vxor.u32 %v143, 2147483648
    %v150 = vsel %vm148, %v142, %v149
    %vm151 = vcmp.eq.s32.totalorder %v146, 2
    %v152 = vxor.u32 %v142, 2147483648
    %v153 = vsel %vm151, %v152, %v143
    %v154 = vsel %vm147, %v150, %v153
    %v155 = vsel %vm144, nan, %v154
    %v156 = vand.u32 2147483647, %v51
    %vm157 = vcmp.le.f32.partialorder %v156, 0.7853982
    %vm158 = vcmp.lt.s32.totalorder %v51, 0
    %v159 = vand.u32 %v51, 2139095040
    %v160 = vshrl.u32 %v159, 23
    %v161 = vsub.s32 %v160, 127
    %v162 = vand.u32 2147483647, %v51
    %v163 = vand.u32 %v162, 8388607
    %v164 = vor.u32 %v163, 8388608
    %v165 = vsub.s32 0, %v164
    %v166 = vadd.s32 %v161, 1
    %vm167 = vcmp.gt.s32.totalorder %v166, 0
    %v168 = vsel %vm167, %v166, 0
    %v169 = vshrl.u32 %v168, 5
    %v170 = vand.u32 %v168, 31
    %v171 = vsub.s32 32, %v170
    %v172 = vshrl.u32 683565275, %v171
    %v173 = vshll.u32 683565275, %v170
    %v174 = vshrl.u32 2475754826, %v171
    %v175 = vor.u32 %v173, %v174
    %v176 = vshll.u32 2475754826, %v170
    %v177 = vshrl.u32 2131351028, %v171
    %v178 = vor.u32 %v176, %v177
    %v179 = vshll.u32 2131351028, %v170
    %v180 = vshrl.u32 2102212464, %v171
    %v181 = vor.u32 %v179, %v180
    %v182 = vshll.u32 2102212464, %v170
    %v183 = vshrl.u32 920167782, %v171
    %v184 = vor.u32 %v182, %v183
    %v185 = vshll.u32 920167782, %v170
    %v186 = vshrl.u32 1326507024, %v171
    %v187 = vor.u32 %v185, %v186
    %vm188 = vcmp.lt.s32.totalorder %v169, 1
    %vm189 = vcmp.lt.s32.totalorder %v169, 2
    %vm190 = vcmp.lt.s32.totalorder %v169, 3
    %vm191 = vcmp.lt.s32.totalorder %v169, 4
    %v192 = vsel %vm188, %v172, %v175
    %v193 = vsel %vm191, %v181, 2102212464
    %v194 = vsel %vm190, %v178, %v193
    %v195 = vsel %vm189, %v192, %v194
    %v196 = vsel %vm188, %v175, %v178
    %v197 = vsel %vm191, %v184, 920167782
    %v198 = vsel %vm190, %v181, %v197
    %v199 = vsel %vm189, %v196, %v198
    %v200 = vsel %vm188, %v178, %v181
    %v201 = vsel %vm191, %v187, 1326507024
    %v202 = vsel %vm190, %v184, %v201
    %v203 = vsel %vm189, %v200, %v202
    %v204 = vshll.u32 %v164, 8
    %v205 = vmul.u32.u64.compose %v204, %v203
    %v206 = vextract.low.u32 %v205
    %v207 = vextract.high.u32 %v205
    %v208 = vmul.u32.u64.compose %v204, %v199
    %v209 = vextract.low.u32 %v208
    %v210 = vextract.high.u32 %v208
    %v211 = vmul.u32 %v204, %v195
    %v212 = vadd.s32 %v207, %v209
    %vm213 = vc.u32 %v207, %v209
    %v214 = vadd.s32 %v210, 1
    %v215 = vsel %vm213, %v214, %v210
    %v216 = vadd.s32 %v211, %v215
    %v217 = vadd.s32 %v216, 536870912
    %v218 = vshrl.u32 %v217, 30
    %v219 = vshll.u32 %v218, 30
    %v220 = vsub.s32 %v216, %v219
    %vm221 = vcmp.lt.s32.totalorder %v220, 0
    %v222 = vsub.s32 0, %v220
    %v223 = vsel %vm221, %v222, %v220
    %v224 = vclz %v223
    %v225 = vsub.s32 %v224, 2
    %vm226 = vcmp.gt.s32.totalorder 0, %v225
    %v227 = vsel %vm226, 0, %v225
    %v228 = vsub.s32 32, %v227
    %v229 = vshll.u32 %v220, %v227
    %v230 = vshrl.u32 %v212, %v228
    %v231 = vor.u32 %v229, %v230
    %v232 = vsub.s32 4294967266, %v227
    %v233 = vadd.s32 %v232, 127
    %v234 = vshll.u32 %v233, 23
    %v235 = vor.u32 4788187, %v234
    %v236 = vand.u32 2147483647, %v235
    %v238 = vcvt.s32.f32 %v231
    %v239 = vmul.f32 %v238, %v236
    %v240 = vxor.u32 %v239, 2147483648
    %v241 = vsel %vm158, %v240, %v239
    %v242 = vsub.s32 4, %v218
    %v243 = vsel %vm158, %v242, %v218
    %v244 = vsel %vm157, %v51, %v241
    %v245 = vsel %vm157, 0, %v243
    %v246 = vcosq.f32.pop %v244
    %v247 = vsinq.f32.pop %v244
    %vm248 = vweird.f32 %v51
    %v249 = vand.u32 %v245, 3
    %vm250 = vcmp.lt.s32.totalorder %v249, 2
    %vm251 = vcmp.eq.s32.totalorder %v249, 0
    %v252 = vxor.u32 %v247, 2147483648
    %v253 = vsel %vm251, %v246, %v252
    %vm254 = vcmp.eq.s32.totalorder %v249, 2
    %v255 = vxor.u32 %v246, 2147483648
    %v256 = vsel %vm254, %v255, %v247
    %v257 = vsel %vm250, %v253, %v256
    %v258 = vsel %vm248, nan, %v257
    %260 = vrot.lane.b32.xlu0 %v258, 4
    %v261 = vpop.permute.xlu0 %260
    %vm263 = vcmask 31744
    %v264 = vsel %vm263, %v155, %v261
    %v265 = vld [vmem:[%s2] sm:$0xff]
    %v266 = vld [vmem:[%s3] sm:$0x1]
    %v268 = vlaneseq
    %v269 = vshrl.u32 %v268, 7
    %v270 = vsub.s32 0, %v269
    %v271 = vrot.slane %v266, %v270
    %vm273 = vcmask 64512
    %v275 = vsel %vm273, %v264, 0
    %277 = vmatprep.subr.mxu0 0.0
    %278 = vmatpush1.msra.mxu0 0.0
    %279 = vmatprep.subr.mxu0 0.0
    %280 = vmatpush1.msra.mxu0 0.0
    %281 = vmatprep.subr.mxu0 0.0
    %282 = vmatpush1.msra.mxu0 0.0
    %283 = vmatprep.subr.mxu0 0.0
    %284 = vmatpush1.msra.mxu0 0.0
    %285 = vmatprep.subr.mxu0 0.0
    %286 = vmatpush1.msra.mxu0 0.0
    %287 = vmatprep.subr.mxu0 0.0
    %288 = vmatpush1.msra.mxu0 0.0
    %289 = vmatprep.subr.mxu0 0.0
    %290 = vmatpush1.msra.mxu0 0.0
    %291 = vmatprep.subr.mxu0 0.0
    %292 = vmatpush1.msra.mxu0 0.0
    %293 = vmatprep.subr.mxu0 0.0
    %294 = vmatpush1.msra.mxu0 0.0
    %295 = vmatprep.subr.mxu0 0.0
    %296 = vmatpush1.msra.mxu0 0.0
    %297 = vmatprep.subr.mxu0 0.0
    %298 = vmatpush1.msra.mxu0 0.0
    %299 = vmatprep.subr.mxu0 0.0
    %300 = vmatpush1.msra.mxu0 0.0
    %301 = vmatprep.subr.mxu0 0.0
    %302 = vmatpush1.msra.mxu0 0.0
    %303 = vmatprep.subr.mxu0 0.0
    %304 = vmatpush1.msra.mxu0 0.0
    %305 = vmatprep.subr.mxu0 0.0
    %306 = vmatpush1.msra.mxu0 0.0
    %307 = vmatprep.subr.mxu0 0.0
    %308 = vmatpush1.msra.mxu0 %v265
    %309 = vmatprep.subr.mxu0 0.0
    %310 = vmatpush2.msra.mxu0 0.0
    %311 = vmatprep.subr.mxu0 0.0
    %312 = vmatpush2.msra.mxu0 0.0
    %313 = vmatprep.subr.mxu0 0.0
    %314 = vmatpush2.msra.mxu0 0.0
    %315 = vmatprep.subr.mxu0 0.0
    %316 = vmatpush2.msra.mxu0 0.0
    %317 = vmatprep.subr.mxu0 0.0
    %318 = vmatpush2.msra.mxu0 0.0
    %319 = vmatprep.subr.mxu0 0.0
    %320 = vmatpush2.msra.mxu0 0.0
    %321 = vmatprep.subr.mxu0 0.0
    %322 = vmatpush2.msra.mxu0 0.0
    %323 = vmatprep.subr.mxu0 0.0
    %324 = vmatpush2.msra.mxu0 0.0
    %325 = vmatprep.subr.mxu0 0.0
    %326 = vmatpush2.msra.mxu0 0.0
    %327 = vmatprep.subr.mxu0 0.0
    %328 = vmatpush2.msra.mxu0 0.0
    %329 = vmatprep.subr.mxu0 0.0
    %330 = vmatpush2.msra.mxu0 0.0
    %331 = vmatprep.subr.mxu0 0.0
    %332 = vmatpush2.msra.mxu0 0.0
    %333 = vmatprep.subr.mxu0 0.0
    %334 = vmatpush2.msra.mxu0 0.0
    %335 = vmatprep.subr.mxu0 0.0
    %336 = vmatpush2.msra.mxu0 0.0
    %337 = vmatprep.subr.mxu0 0.0
    %338 = vmatpush2.msra.mxu0 0.0
    %339 = vmatprep.subr.mxu0 0.0
    %340 = vmatpush2.msra.mxu0 0.0
    %341 = vmatprep.mubr.f32.mxu0 0.0
    %342 = vmatmul.mubr.f32.gmra.mxu0 %v275
    %v343 = vpop.f32.mrf.mxu0
    %v344 = vadd.f32 %v271, %v343
    %v345 = vpop.f32.mrf.mxu0
    %346 = vdwg.mxu0
    %v347 = vxor.u32 %v344, 2147483648
    %v348 = vmul.f32 %v347, 1.442695
    %v349 = vpow.pop %v348
    %v350 = vadd.f32 %v349, 1.0
    %v351 = vrcp.pop %v350
    %v352 = vmul.f32 1.0, %v351
    %v353 = vmul.f32 %v352, %v344
    %v354 = vld [vmem:[#allocation2] sm:$0xff]
    %v355 = vld [vmem:[#allocation2 + $0x8] sm:$0xff]
    %v356 = vld [vmem:[#allocation2 + $0x10] sm:$0xff]
    %v357 = vld [vmem:[#allocation2 + $0x18] sm:$0xff]
    %v358 = vld [vmem:[%s5] sm:$0x1]
    %v360 = vlaneseq
    %v361 = vshrl.u32 %v360, 7
    %v362 = vsub.s32 0, %v361
    %v363 = vrot.slane %v358, %v362
    %vm365 = vcmask 261120
    %v367 = vsel %vm365, %v353, 0
    %369 = vmatprep.subr.mxu0 0.0
    %370 = vmatpush1.msra.mxu0 0.0
    %371 = vmatprep.subr.mxu0 0.0
    %372 = vmatpush1.msra.mxu0 0.0
    %373 = vmatprep.subr.mxu0 0.0
    %374 = vmatpush1.msra.mxu0 0.0
    %375 = vmatprep.subr.mxu0 0.0
    %376 = vmatpush1.msra.mxu0 0.0
    %377 = vmatprep.subr.mxu0 0.0
    %378 = vmatpush1.msra.mxu0 0.0
    %379 = vmatprep.subr.mxu0 0.0
    %380 = vmatpush1.msra.mxu0 0.0
    %381 = vmatprep.subr.mxu0 0.0
    %382 = vmatpush1.msra.mxu0 0.0
    %383 = vmatprep.subr.mxu0 0.0
    %384 = vmatpush1.msra.mxu0 0.0
    %385 = vmatprep.subr.mxu0 0.0
    %386 = vmatpush1.msra.mxu0 0.0
    %387 = vmatprep.subr.mxu0 0.0
    %388 = vmatpush1.msra.mxu0 0.0
    %389 = vmatprep.subr.mxu0 0.0
    %390 = vmatpush1.msra.mxu0 0.0
    %391 = vmatprep.subr.mxu0 0.0
    %392 = vmatpush1.msra.mxu0 0.0
    %393 = vmatprep.subr.mxu0 0.0
    %394 = vmatpush1.msra.mxu0 %v357
    %395 = vmatprep.subr.mxu0 0.0
    %396 = vmatpush1.msra.mxu0 %v356
    %397 = vmatprep.subr.mxu0 0.0
    %398 = vmatpush1.msra.mxu0 %v355
    %399 = vmatprep.subr.mxu0 0.0
    %400 = vmatpush1.msra.mxu0 %v354
    %401 = vmatprep.subr.mxu0 0.0
    %402 = vmatpush2.msra.mxu0 0.0
    %403 = vmatprep.subr.mxu0 0.0
    %404 = vmatpush2.msra.mxu0 0.0
    %405 = vmatprep.subr.mxu0 0.0
    %406 = vmatpush2.msra.mxu0 0.0
    %407 = vmatprep.subr.mxu0 0.0
    %408 = vmatpush2.msra.mxu0 0.0
    %409 = vmatprep.subr.mxu0 0.0
    %410 = vmatpush2.msra.mxu0 0.0
    %411 = vmatprep.subr.mxu0 0.0
    %412 = vmatpush2.msra.mxu0 0.0
    %413 = vmatprep.subr.mxu0 0.0
    %414 = vmatpush2.msra.mxu0 0.0
    %415 = vmatprep.subr.mxu0 0.0
    %416 = vmatpush2.msra.mxu0 0.0
    %417 = vmatprep.subr.mxu0 0.0
    %418 = vmatpush2.msra.mxu0 0.0
    %419 = vmatprep.subr.mxu0 0.0
    %420 = vmatpush2.msra.mxu0 0.0
    %421 = vmatprep.subr.mxu0 0.0
    %422 = vmatpush2.msra.mxu0 0.0
    %423 = vmatprep.subr.mxu0 0.0
    %424 = vmatpush2.msra.mxu0 0.0
    %425 = vmatprep.subr.mxu0 0.0
    %426 = vmatpush2.msra.mxu0 0.0
    %427 = vmatprep.subr.mxu0 0.0
    %428 = vmatpush2.msra.mxu0 0.0
    %429 = vmatprep.subr.mxu0 0.0
    %430 = vmatpush2.msra.mxu0 0.0
    %431 = vmatprep.subr.mxu0 0.0
    %432 = vmatpush2.msra.mxu0 0.0
    %433 = vmatprep.mubr.f32.mxu0 0.0
    %434 = vmatmul.mubr.f32.gmra.mxu0 %v367
    %v435 = vpop.f32.mrf.mxu0
    %v436 = vadd.f32 %v363, %v435
    %v437 = vpop.f32.mrf.mxu0
    %438 = vdwg.mxu0
    %439 = vst.msk [vmem:[#allocation5] sm:$0xff] %vm365, %v436
    // Predicated region
    $region30: #{tpu_custom_call.1} parent=1 // pred_check
      _
    $region31: #{tpu_custom_call.1} parent=1 // pred_check_branch
      %441 = sbr.rel (0) target = $region33
    $region32: #{tpu_custom_call.1} parent=1 // pred_region
      %s443 = ssub.s32 128, 128
      %444 = vsyncadd [#allocation4], %s443
      %s446 = sshll.u32 [#allocation5], 4
      %s447 = int_to_ptr.vmem [resolvable:$true] %s446
      %449 = dma.vmem_to_hbm [thread:$0]  %s447, 128, %s6, [#allocation4]
    $region33: #{tpu_custom_call.1} parent=1 // pred_fallthru
      _
    // Predicated region
    $region34: #{tpu_custom_call.1} parent=1 // pred_check
      _
    $region35: #{tpu_custom_call.1} parent=1 // pred_check_branch
      %451 = sbr.rel (0) target = $region37
    $region36: #{tpu_custom_call.1} parent=1 // pred_region
      %452 = dma.done [#allocation4], 128
    $region37: #{tpu_custom_call.1} parent=1 // pred_fallthru
      _
    %453 = vsyncpa [#allocation3], 1
    %454 = vsyncpa [#allocation4], 1

</llo_original>
